<compile_context>
chip_gen: v6e
topology: v6e:2x2x1
jax: 0.10.0
libtpu: 0.0.40
codegen_flags: <defaults>
</compile_context>

<pallas_src>
import functools

import jax
import jax.numpy as jnp
from jax import lax
from jax.experimental import pallas as pl
from jax.experimental.pallas import tpu as pltpu

_LANE = 128
# VMEM budget for the streamed input tiles:
#   2 inputs x 2 pipeline buffers x (B, TK) x itemsize  <=  budget.
# 16 MiB leaves headroom under the 32 MiB scoped limit requested below and
# under v7x's 64 MiB physical VMEM.
_INPUT_TILE_VMEM_BUDGET = 16 * 1024 * 1024


def _round_up(x, m):
    return ((x + m - 1) // m) * m


def _auto_block_k(batch, d, itemsize):
    max_tk = _INPUT_TILE_VMEM_BUDGET // (4 * batch * itemsize)
    max_tk = max(_LANE, (max_tk // _LANE) * _LANE)
    return min(max_tk, _round_up(max(d, 1), _LANE))


def _mmd_kernel(t_ref, s_ref, o_ref, gram_ref, *, sigma_list, m):
    """One grid step: accumulate Z Z^T over a feature tile; finalize at the end.

    t_ref, s_ref : (B, TK) VMEM tiles of Target / Source (input dtype).
    o_ref        : (1, 1) SMEM scalar output.
    gram_ref     : (2B, 2B) f32 VMEM accumulator, resident across the grid.
    """
    k = pl.program_id(0)

    @pl.when(k == 0)
    def _init():
        gram_ref[...] = jnp.zeros_like(gram_ref)

    x = t_ref[...]                                    # (m, TK)   Target tile
    y = s_ref[...]                                    # (m, TK)   Source tile
    z = jnp.concatenate([x, y], axis=0)               # (2m, TK)  Z = [X; Y]
    dn = (((1,), (1,)), ((), ()))                     # contract the feature dim
    gram_ref[...] += lax.dot_general(z, z, dn,
                                     preferred_element_type=jnp.float32)

    @pl.when(k == pl.num_programs(0) - 1)
    def _finalize():
        gram = gram_ref[...]                          # (2m, 2m) f32
        n = 2 * m
        row = lax.broadcasted_iota(jnp.int32, (n, n), 0)
        col = lax.broadcasted_iota(jnp.int32, (n, n), 1)

        # Squared norms from the Gram diagonal (no pass over the big operands).
        sq = jnp.sum(jnp.where(row == col, gram, 0.0), axis=-1,
                     keepdims=True)                   # (2m, 1)
        # Pairwise squared Euclidean distances over Z.
        dist = sq - 2.0 * gram + sq.T                 # (2m, 2m)

        # Mixture-of-RBF kernel matrix (static, unrolled sigma loop).
        kmat = jnp.zeros_like(dist)
        for sigma in sigma_list:
            gamma = 1.0 / (2.0 * sigma * sigma)
            kmat = kmat + jnp.exp(-gamma * dist)

        # +1 on the XX / YY blocks, -1 on XY / YX:
        #   sum(sgn * K) = sum K_XX + sum K_YY - 2 * sum K_XY.
        sgn = jnp.where((row < m) == (col < m), 1.0, -1.0)
        mmd2 = jnp.sum(sgn * kmat) / jnp.float32(m * m)   # biased MMD^2
        mmd2 = jnp.maximum(mmd2, 0.0)                 # F.relu
        o_ref[0, 0] = jnp.sqrt(mmd2)                  # torch.sqrt


def mmd_loss(target, source, base=1.0, sigma_list=(1.0, 2.0, 10.0),
             block_k=None):
    """Pallas implementation of MMDLoss.forward(Target, Source)."""
    sigmas = tuple(float(s) / float(base) for s in sigma_list)

    # Glue: Target.view(B, -1) / Source.view(B, -1).
    b = target.shape[0]
    t = target.reshape(b, -1)
    s = source.reshape(source.shape[0], -1)
    assert t.shape == s.shape, "mix_rbf_mmd2 requires matching batch/feature shapes"

    dtype = jnp.promote_types(t.dtype, s.dtype)
    t = t.astype(dtype)        # stream in the input dtype (bf16 stays bf16)
    s = s.astype(dtype)
    d = t.shape[1]
    itemsize = jnp.dtype(dtype).itemsize

    tk_max = _auto_block_k(b, d, itemsize)
    tk = tk_max if block_k is None else min(_round_up(block_k, _LANE), tk_max)

    # Zero-pad D to a multiple of the tile; zero columns contribute nothing to
    # the Gram accumulation, so padding is numerically free.
    d_pad = _round_up(max(d, 1), tk)
    if d_pad != d:
        t = jnp.pad(t, ((0, 0), (0, d_pad - d)))
        s = jnp.pad(s, ((0, 0), (0, d_pad - d)))
    n_steps = d_pad // tk

    kernel = functools.partial(_mmd_kernel, sigma_list=sigmas, m=b)
    grid_spec = pltpu.PrefetchScalarGridSpec(
        num_scalar_prefetch=0,
        grid=(n_steps,),
        in_specs=[
            pl.BlockSpec((b, tk), lambda k: (0, k)),
            pl.BlockSpec((b, tk), lambda k: (0, k)),
        ],
        out_specs=pl.BlockSpec((1, 1), lambda k: (0, 0),
                               memory_space=pltpu.MemorySpace.SMEM),
        scratch_shapes=[pltpu.VMEM((2 * b, 2 * b), jnp.float32)],
    )
    out = pl.pallas_call(
        kernel,
        out_shape=jax.ShapeDtypeStruct((1, 1), jnp.float32),
        grid_spec=grid_spec,
        compiler_params=pltpu.CompilerParams(
            dimension_semantics=("arbitrary",),      # D is a reduction axis
            vmem_limit_bytes=32 * 1024 * 1024,
        ),
    )(t, s)
    return out[0, 0]


def _mmd_reference(target, source, base=1.0, sigma_list=(1.0, 2.0, 10.0)):
    """Pure-JAX reference of the same math (for the sanity check)."""
    sigmas = [float(s) / float(base) for s in sigma_list]
    x = target.reshape(target.shape[0], -1).astype(jnp.float32)
    y = source.reshape(source.shape[0], -1).astype(jnp.float32)
    m = x.shape[0]
    z = jnp.concatenate([x, y], axis=0)
    zzt = jnp.dot(z, z.T, precision=lax.Precision.HIGHEST)
    sq = jnp.diag(zzt)[:, None]
    exponent = sq - 2.0 * zzt + sq.T
    k = jnp.zeros_like(exponent)
    for sigma in sigmas:
        k = k + jnp.exp(-(1.0 / (2.0 * sigma ** 2)) * exponent)
    k_xx, k_xy, k_yy = k[:m, :m], k[:m, m:], k[m:, m:]
    mmd2 = (jnp.sum(k_xx) + jnp.sum(k_yy) - 2.0 * jnp.sum(k_xy)) / (m * m)
    return jnp.sqrt(jnp.maximum(mmd2, 0.0))


if __name__ == "__main__":
    # Shapes consistent with the module's docstring (B x 2048 x 1 x 1), scaled
    # so the RBF kernels are non-degenerate. block_k=768 forces a 3-step
    # streamed grid with a zero-padded partial last tile (D=2048 -> 2304).
    B, C, H, W = 8, 2048, 1, 1
    key = jax.random.PRNGKey(0)
    k_t, k_s = jax.random.split(key)
    target = 0.05 * jax.random.normal(k_t, (B, C, H, W), dtype=jnp.float32)
    source = 0.05 * jax.random.normal(k_s, (B, C, H, W), dtype=jnp.float32) + 0.02

    loss = jax.block_until_ready(mmd_loss(target, source, block_k=768))
    ref = jax.block_until_ready(_mmd_reference(target, source))

    assert jnp.isfinite(loss), "non-finite MMD loss"
    assert abs(float(loss) - float(ref)) < 2e-4, (float(loss), float(ref))
    print("KERNEL_OK")
</pallas_src>

<mosaic_0001>
module attributes {stable_mosaic.version = 11 : i64} {
  func.func @_mmd_kernel(%arg0: i32, %arg1: memref<8x768xf32, #tpu.memory_space<vmem>>, %arg2: memref<8x768xf32, #tpu.memory_space<vmem>>, %arg3: memref<1x1xf32, #tpu.memory_space<smem>>, %arg4: memref<16x16xf32, #tpu.memory_space<vmem>>) attributes {dimension_semantics = [#tpu.dimension_semantics<arbitrary>], iteration_bounds = array<i64: 3>, scalar_prefetch = 0 : i64, scratch_operands = 1 : i64, tpu.core_type = #tpu.core_type<tc>, window_params = [{transform_indices = @transform_0, window_bounds = array<i64: 8, 768>}, {transform_indices = @transform_1, window_bounds = array<i64: 8, 768>}, {transform_indices = @transform_2, window_bounds = array<i64: 1, 1>}]} {
    %c0_i32 = arith.constant 0 : i32
    %0 = arith.cmpi eq, %arg0, %c0_i32 : i32
    %1 = arith.extui %0 : i1 to i32
    %c0_i32_0 = arith.constant 0 : i32
    %2 = arith.cmpi ne, %1, %c0_i32_0 : i32
    scf.if %2 {
      %cst_9 = arith.constant 0.000000e+00 : f32
      %13 = vector.broadcast %cst_9 : f32 to vector<16x16xf32>
      %c0_10 = arith.constant 0 : index
      %c0_11 = arith.constant 0 : index
      %14 = vector.load %arg4[%c0_10, %c0_11] : memref<16x16xf32, #tpu.memory_space<vmem>>, vector<16x16xf32>
      tpu.vector_store %arg4[%c0_10, %c0_11], %13 {strides = array<i32>} : memref<16x16xf32, #tpu.memory_space<vmem>>, vector<16x16xf32>,
    } else {
    }
    %c0 = arith.constant 0 : index
    %c0_1 = arith.constant 0 : index
    %3 = vector.load %arg1[%c0, %c0_1] : memref<8x768xf32, #tpu.memory_space<vmem>>, vector<8x768xf32>
    %c0_2 = arith.constant 0 : index
    %c0_3 = arith.constant 0 : index
    %4 = vector.load %arg2[%c0_2, %c0_3] : memref<8x768xf32, #tpu.memory_space<vmem>>, vector<8x768xf32>
    %5 = tpu.concatenate %3, %4 in 0 : vector<8x768xf32>, vector<8x768xf32> -> vector<16x768xf32>
    %c0_4 = arith.constant 0 : index
    %c0_5 = arith.constant 0 : index
    %6 = vector.load %arg4[%c0_4, %c0_5] : memref<16x16xf32, #tpu.memory_space<vmem>>, vector<16x16xf32>
    %cst = arith.constant dense<0.000000e+00> : vector<16x16xf32>
    %7 = tpu.matmul %5, %5, %cst {dimension_numbers = #tpu.dot_dimension_numbers<[1], [1], [0], [0], [0, 0, 1, 0], [], []>} : vector<16x768xf32>, vector<16x768xf32>, vector<16x16xf32> -> vector<16x16xf32>
    %8 = arith.addf %6, %7 : vector<16x16xf32>
    %c0_6 = arith.constant 0 : index
    %c0_7 = arith.constant 0 : index
    %9 = vector.load %arg4[%c0_6, %c0_7] : memref<16x16xf32, #tpu.memory_space<vmem>>, vector<16x16xf32>
    tpu.vector_store %arg4[%c0_6, %c0_7], %8 {strides = array<i32>} : memref<16x16xf32, #tpu.memory_space<vmem>>, vector<16x16xf32>,
    %c2_i32 = arith.constant 2 : i32
    %10 = arith.cmpi eq, %arg0, %c2_i32 : i32
    %11 = arith.extui %10 : i1 to i32
    %c0_i32_8 = arith.constant 0 : i32
    %12 = arith.cmpi ne, %11, %c0_i32_8 : i32
    scf.if %12 {
      %c0_9 = arith.constant 0 : index
      %c0_10 = arith.constant 0 : index
      %13 = vector.load %arg4[%c0_9, %c0_10] : memref<16x16xf32, #tpu.memory_space<vmem>>, vector<16x16xf32>
      %14 = tpu.iota {dimensions = array<i32: 0>} : vector<16x16xi32>
      %15 = tpu.iota {dimensions = array<i32: 1>} : vector<16x16xi32>
      %16 = arith.cmpi eq, %14, %15 : vector<16x16xi32>
      %cst_11 = arith.constant 0.000000e+00 : f32
      %17 = vector.broadcast %cst_11 : f32 to vector<16x16xf32>
      %18 = arith.select %16, %13, %17 : vector<16x16xi1>, vector<16x16xf32>
      %cst_12 = arith.constant dense<0.000000e+00> : vector<16xf32>
      %19 = vector.multi_reduction <add>, %18, %cst_12 [1] : vector<16x16xf32> to vector<16xf32>
      %20 = vector.shape_cast %19 : vector<16xf32> to vector<16x1xf32>
      %cst_13 = arith.constant 2.000000e+00 : f32
      %21 = vector.broadcast %cst_13 : f32 to vector<16x16xf32>
      %22 = arith.mulf %21, %13 : vector<16x16xf32>
      %23 = vector.broadcast %20 : vector<16x1xf32> to vector<16x16xf32>
      %24 = arith.subf %23, %22 : vector<16x16xf32>
      %25 = tpu.transpose %20, [1, 0] : vector<16x1xf32> -> vector<1x16xf32>
      %26 = vector.broadcast %25 : vector<1x16xf32> to vector<16x16xf32>
      %27 = arith.addf %24, %26 : vector<16x16xf32>
      %cst_14 = arith.constant 0.000000e+00 : f32
      %28 = vector.broadcast %cst_14 : f32 to vector<16x16xf32>
      %cst_15 = arith.constant -5.000000e-01 : f32
      %29 = vector.broadcast %cst_15 : f32 to vector<16x16xf32>
      %30 = arith.mulf %29, %27 : vector<16x16xf32>
      %31 = math.exp %30 : vector<16x16xf32>
      %32 = arith.addf %28, %31 : vector<16x16xf32>
      %cst_16 = arith.constant -1.250000e-01 : f32
      %33 = vector.broadcast %cst_16 : f32 to vector<16x16xf32>
      %34 = arith.mulf %33, %27 : vector<16x16xf32>
      %35 = math.exp %34 : vector<16x16xf32>
      %36 = arith.addf %32, %35 : vector<16x16xf32>
      %cst_17 = arith.constant -5.000000e-03 : f32
      %37 = vector.broadcast %cst_17 : f32 to vector<16x16xf32>
      %38 = arith.mulf %37, %27 : vector<16x16xf32>
      %39 = math.exp %38 : vector<16x16xf32>
      %40 = arith.addf %36, %39 : vector<16x16xf32>
      %c8_i32 = arith.constant 8 : i32
      %41 = vector.broadcast %c8_i32 : i32 to vector<16x16xi32>
      %42 = arith.cmpi slt, %14, %41 : vector<16x16xi32>
      %c8_i32_18 = arith.constant 8 : i32
      %43 = vector.broadcast %c8_i32_18 : i32 to vector<16x16xi32>
      %44 = arith.cmpi slt, %15, %43 : vector<16x16xi32>
      %45 = arith.xori %42, %44 : vector<16x16xi1>
      %cst_19 = arith.constant dense<true> : vector<16x16xi1>
      %46 = arith.xori %45, %cst_19 : vector<16x16xi1>
      %cst_20 = arith.constant 1.000000e+00 : f32
      %cst_21 = arith.constant -1.000000e+00 : f32
      %47 = vector.broadcast %cst_20 : f32 to vector<16x16xf32>
      %48 = vector.broadcast %cst_21 : f32 to vector<16x16xf32>
      %49 = arith.select %46, %47, %48 : vector<16x16xi1>, vector<16x16xf32>
      %50 = arith.mulf %49, %40 : vector<16x16xf32>
      %51 = vector.shape_cast %50 : vector<16x16xf32> to vector<1x16x16xf32>
      %cst_22 = arith.constant dense<0.000000e+00> : vector<1xf32>
      %52 = vector.multi_reduction <add>, %51, %cst_22 [1, 2] : vector<1x16x16xf32> to vector<1xf32>
      %53 = vector.shape_cast %52 : vector<1xf32> to vector<1x1x1xf32>
      %54 = vector.extract %53[0, 0, 0] : f32 from vector<1x1x1xf32>
      %cst_23 = arith.constant 6.400000e+01 : f32
      %55 = arith.divf %54, %cst_23 : f32
      %cst_24 = arith.constant 0.000000e+00 : f32
      %56 = arith.maximumf %55, %cst_24 : f32
      %57 = math.sqrt %56 : f32
      %c0_25 = arith.constant 0 : index
      %c0_26 = arith.constant 0 : index
      %58 = memref.load %arg3[%c0_25, %c0_26] : memref<1x1xf32, #tpu.memory_space<smem>>
      memref.store %57, %arg3[%c0_25, %c0_26] : memref<1x1xf32, #tpu.memory_space<smem>>
    } else {
    }
    return
  }
  func.func @transform_0(%arg0: i32) -> (i32, i32) {
    %c0_i32 = arith.constant 0 : i32
    %c0_i32_0 = arith.constant 0 : i32
    return %c0_i32, %arg0 : i32, i32
  }
  func.func @transform_1(%arg0: i32) -> (i32, i32) {
    %c0_i32 = arith.constant 0 : i32
    %c0_i32_0 = arith.constant 0 : i32
    return %c0_i32, %arg0 : i32, i32
  }
  func.func @transform_2(%arg0: i32) -> (i32, i32) {
    %c0_i32 = arith.constant 0 : i32
    %c0_i32_0 = arith.constant 0 : i32
    %c0_i32_1 = arith.constant 0 : i32
    return %c0_i32, %c0_i32_0 : i32, i32
  }
}

</mosaic_0001>

<llo_original>
// kernel: tpu_custom_call.1
$region0: #{tpu_custom_call.1}
  #allocation0 [shape = 'u32[]', space=smem, size = 0x4, offset = 0x4, fixed_abs, tag = 'smem constant byte address 0x4 - core index']
  #allocation1 [shape = 'u32[144,128]{1,0:T(1,128)}', space=vmem, size = 0x12000, scoped, tag = 'internal scratch']
  #allocation2 [shape = 'f32[16,16]{1,0:T(8,128)}', space=vmem, size = 0x2000, scoped, tag = 'scratch operand']
  %s0 = inlined_call_operand.hbm [shape: f32[8,2304], index: 0, kind: input, shape index: {}]
  %s1 = inlined_call_operand.hbm [shape: f32[8,2304], index: 1, kind: input, shape index: {}]
  %s2 = inlined_call_operand.hbm [shape: f32[1,1], index: 2, kind: output, shape index: {}]
  %s3 = sld [smem:[#allocation0]]
  $region57: #{tpu_custom_call.1} parent=0
    _
  %s5 = ssub.s32 1, %s3
  %s6 = scalar_select 0, %s5, %s3
  $region1: #{tpu_custom_call.1} parent=0
    #allocation3 [shape = 'u8[49152]{0}', space=vmem, size = 0xc000, scoped, tag = 'input window, operand 0']
    #allocation4 [shape = 's32[2]{0}', space=sflag, size = 0x8, scoped, tag = 'scoped memory for tpu_custom_call.1']
    #allocation5 [shape = 's32[2]{0}', space=sflag, size = 0x8, scoped, tag = 'scoped memory for tpu_custom_call.1']
    #allocation6 [shape = 'u8[49152]{0}', space=vmem, size = 0xc000, scoped, tag = 'input window, operand 1']
    #allocation7 [shape = 's32[2]{0}', space=sflag, size = 0x8, scoped, tag = 'scoped memory for tpu_custom_call.1']
    #allocation8 [shape = 'u8[512]{0}', space=smem, size = 0x200, scoped, tag = 'output window, operand 0, single buffered']
    %7 = vsyncpa [#allocation4], 0
    %s8 = scalar_lea.sflag [#allocation4], 1
    %9 = vsyncpa %s8, 0
    %10 = vsyncpa [#allocation7], 0
    %s11 = scalar_lea.sflag [#allocation7], 1
    %12 = vsyncpa %s11, 0
    %13 = vsyncpa [#allocation5], 0
    loop: start=0, step=1, limit=5
    $region2: #{tpu_custom_call.1} parent=1 // loop_pre_header
      _
    $region3: #{tpu_custom_call.1} parent=1 // loop_header
      %s15 = sphi 0, %s19
      %p16 = scmp.ge.s32.totalorder %s15, 5
      %s25 = sphi 0, %s27
      %s28 = sphi 0, %s25
      %s29 = sphi 0, %s28
      %s45 = sphi 0, %s29
      %s51 = sphi 0, %s53
      %s54 = sphi 0, %s51
      %s55 = sphi 0, %s54
      %s71 = sphi 0, %s55
      %s75 = sphi 0, %s75
      %s77 = sphi 0, %s75
      %s78 = sphi 0, %s77
      %s92 = sphi 0, %s78
    $region4: #{tpu_custom_call.1} parent=1 // loop_header_branch
      %18 = sbr.rel (%p16) target = $region8
    $region5: #{tpu_custom_call.1} parent=1 // loop_body
      %s20 = ssub.s32 %s15, 1
      %s21 = ssub.s32 %s15, 2
      %s22 = sadd.s32 %s15, 1
      %s23 = ssub.s32 %s15, %s22
      %p24 = scmp.eq.s32.totalorder %s23, 0
      %s26 = sadd.s32 %s25, 1
      %s27 = scalar_select %p24, %s25, %s26
      %p30 = pneg %p24
      %p31 = scmp.eq.s32.totalorder %s15, 2
      %p32 = por %p30, %p31
      %p33 = scmp.ne.s32.totalorder %s25, %s28
      %p34 = scmp.eq.s32.totalorder %s15, 0
      %p35 = por %p33, %p34
      %p36 = scmp.ne.s32.totalorder %s25, %s28
      %p37 = scmp.eq.s32.totalorder %s20, 2
      %p38 = por %p36, %p37
      %p39 = scmp.ne.s32.totalorder %s28, %s29
      %p40 = scmp.eq.s32.totalorder %s20, 0
      %p41 = por %p39, %p40
      %p42 = scmp.ne.s32.totalorder %s28, %s29
      %p43 = scmp.eq.s32.totalorder %s21, 2
      %p44 = por %p42, %p43
      %p46 = scmp.ne.s32.totalorder %s29, %s45
      %p47 = scmp.eq.s32.totalorder %s21, 0
      %p48 = por %p46, %p47
      %s49 = ssub.s32 %s15, %s22
      %p50 = scmp.eq.s32.totalorder %s49, 0
      %s52 = sadd.s32 %s51, 1
      %s53 = scalar_select %p50, %s51, %s52
      %p56 = pneg %p50
      %p57 = scmp.eq.s32.totalorder %s15, 2
      %p58 = por %p56, %p57
      %p59 = scmp.ne.s32.totalorder %s51, %s54
      %p60 = scmp.eq.s32.totalorder %s15, 0
      %p61 = por %p59, %p60
      %p62 = scmp.ne.s32.totalorder %s51, %s54
      %p63 = scmp.eq.s32.totalorder %s20, 2
      %p64 = por %p62, %p63
      %p65 = scmp.ne.s32.totalorder %s54, %s55
      %p66 = scmp.eq.s32.totalorder %s20, 0
      %p67 = por %p65, %p66
      %p68 = scmp.ne.s32.totalorder %s54, %s55
      %p69 = scmp.eq.s32.totalorder %s21, 2
      %p70 = por %p68, %p69
      %p72 = scmp.ne.s32.totalorder %s55, %s71
      %p73 = scmp.eq.s32.totalorder %s21, 0
      %p74 = por %p72, %p73
      %s76 = sadd.s32 %s75, 1
      %p79 = scmp.eq.s32.totalorder %s15, 2
      %p80 = scmp.ne.s32.totalorder %s75, %s77
      %p81 = scmp.eq.s32.totalorder %s15, 0
      %p82 = por %p80, %p81
      %p83 = scmp.ne.s32.totalorder %s75, %s77
      %p84 = scmp.eq.s32.totalorder %s20, 2
      %p85 = por %p83, %p84
      %p86 = scmp.ne.s32.totalorder %s77, %s78
      %p87 = scmp.eq.s32.totalorder %s20, 0
      %p88 = por %p86, %p87
      %p89 = scmp.ne.s32.totalorder %s77, %s78
      %p90 = scmp.eq.s32.totalorder %s21, 2
      %p91 = por %p89, %p90
      %p93 = scmp.ne.s32.totalorder %s78, %s92
      %p94 = scmp.eq.s32.totalorder %s21, 0
      %p95 = por %p93, %p94
      %p96 = scmp.le.s32.totalorder 1, %s15
      %p97 = scmp.lt.s32.totalorder %s15, 4
      %p98 = pnand %p96, %p97
      %p99 = pneg %p98
      // Predicated region
      $region9: #{tpu_custom_call.1} parent=5 // pred_check
        _
      $region10: #{tpu_custom_call.1} parent=5 // pred_check_branch
        %101 = sbr.rel (%p98) target = $region12
      $region11: #{tpu_custom_call.1} parent=5 // pred_region
        %s102 = ssub.s32 %s15, 1
      $region12: #{tpu_custom_call.1} parent=5 // pred_fallthru
        _
      %p103 = scmp.lt.s32.totalorder %s15, 3
      // Predicated region
      $region13: #{tpu_custom_call.1} parent=5 // pred_check
        %p104 = pneg %p103
      $region14: #{tpu_custom_call.1} parent=5 // pred_check_branch
        %106 = sbr.rel (%p104) target = $region16
      $region15: #{tpu_custom_call.1} parent=5 // pred_region
        // Predicated region
        $region17: #{tpu_custom_call.1} parent=15 // pred_check
          %p107 = pneg %p35
        $region18: #{tpu_custom_call.1} parent=15 // pred_check_branch
          %109 = sbr.rel (%p107) target = $region20
        $region19: #{tpu_custom_call.1} parent=15 // pred_region
          %s110 = sand.u32 %s25, 1
          %s111 = scalar_lea.sflag [#allocation4], %s110
          %s112 = sand.u32 %s25, 1
          %s113 = smul.addr %s112, 48
          %s114 = scalar_lea.vmem [#allocation3], %s113
          %s115 = smul.u32 6, %s15
          %s117 = ssub.s32 768, 768
          %118 = vsyncadd %s111, %s117
          %s119 = smul.addr %s115, 128
          %s120 = scalar_lea.hbm %s0, %s119
          %s122 = sshll.u32 %s114, 4
          %s123 = int_to_ptr.vmem [resolvable:$true] %s122
          %125 = dma.hbm_to_vmem [thread:$0]  %s120, 768, %s123, %s111
        $region20: #{tpu_custom_call.1} parent=15 // pred_fallthru
          _
        // Predicated region
        $region21: #{tpu_custom_call.1} parent=15 // pred_check
          %p126 = pneg %p61
        $region22: #{tpu_custom_call.1} parent=15 // pred_check_branch
          %128 = sbr.rel (%p126) target = $region24
        $region23: #{tpu_custom_call.1} parent=15 // pred_region
          %s129 = sand.u32 %s51, 1
          %s130 = scalar_lea.sflag [#allocation7], %s129
          %s131 = sand.u32 %s51, 1
          %s132 = smul.addr %s131, 48
          %s133 = scalar_lea.vmem [#allocation6], %s132
          %s134 = smul.u32 6, %s15
          %s136 = ssub.s32 768, 768
          %137 = vsyncadd %s130, %s136
          %s138 = smul.addr %s134, 128
          %s139 = scalar_lea.hbm %s1, %s138
          %s141 = sshll.u32 %s133, 4
          %s142 = int_to_ptr.vmem [resolvable:$true] %s141
          %144 = dma.hbm_to_vmem [thread:$0]  %s139, 768, %s142, %s130
        $region24: #{tpu_custom_call.1} parent=15 // pred_fallthru
          _
      $region16: #{tpu_custom_call.1} parent=5 // pred_fallthru
        _
      %p145 = scmp.le.s32.totalorder 1, %s15
      %p146 = scmp.lt.s32.totalorder %s15, 4
      %p147 = pnand %p145, %p146
      %p148 = pneg %p147
      // Predicated region
      $region25: #{tpu_custom_call.1} parent=5 // pred_check
        _
      $region26: #{tpu_custom_call.1} parent=5 // pred_check_branch
        %150 = sbr.rel (%p147) target = $region28
      $region27: #{tpu_custom_call.1} parent=5 // pred_region
        %s151 = ssub.s32 %s15, 1
        %s152 = sand.u32 %s28, 1
        %s153 = scalar_lea.sflag [#allocation4], %s152
        %s154 = sand.u32 %s28, 1
        %s155 = smul.addr %s154, 48
        %s156 = scalar_lea.vmem [#allocation3], %s155
        // Predicated region
        $region29: #{tpu_custom_call.1} parent=27 // pred_check
          %p157 = pneg %p41
        $region30: #{tpu_custom_call.1} parent=27 // pred_check_branch
          %159 = sbr.rel (%p157) target = $region32
        $region31: #{tpu_custom_call.1} parent=27 // pred_region
          %160 = dma.done %s153, 768
        $region32: #{tpu_custom_call.1} parent=27 // pred_fallthru
          _
        %s161 = sand.u32 %s54, 1
        %s162 = scalar_lea.sflag [#allocation7], %s161
        %s163 = sand.u32 %s54, 1
        %s164 = smul.addr %s163, 48
        %s165 = scalar_lea.vmem [#allocation6], %s164
        // Predicated region
        $region33: #{tpu_custom_call.1} parent=27 // pred_check
          %p166 = pneg %p67
        $region34: #{tpu_custom_call.1} parent=27 // pred_check_branch
          %168 = sbr.rel (%p166) target = $region36
        $region35: #{tpu_custom_call.1} parent=27 // pred_region
          %169 = dma.done %s162, 768
        $region36: #{tpu_custom_call.1} parent=27 // pred_fallthru
          _
        %s170 = sand.u32 %s28, 1
        %s171 = scalar_lea.sflag [#allocation4], %s170
        %s172 = sand.u32 %s28, 1
        %s173 = smul.addr %s172, 48
        %s174 = scalar_lea.vmem [#allocation3], %s173
        %p175 = pneg %p41
        %p176 = pneg %p38
        %s177 = sand.u32 %s54, 1
        %s178 = scalar_lea.sflag [#allocation7], %s177
        %s179 = sand.u32 %s54, 1
        %s180 = smul.addr %s179, 48
        %s181 = scalar_lea.vmem [#allocation6], %s180
        %p182 = pneg %p67
        %p183 = pneg %p64
        %p184 = pneg %p88
        %p185 = pneg %p85
        %s186 = smul.u32 6, %s20
        %s187 = smul.u32 6, %s20
        %p188 = scmp.eq.s32.totalorder %s20, 0
        // Predicated region
        $region37: #{tpu_custom_call.1} parent=27 // pred_check
          %p189 = pneg %p188
        $region38: #{tpu_custom_call.1} parent=27 // pred_check_branch
          %191 = sbr.rel (%p189) target = $region40
        $region39: #{tpu_custom_call.1} parent=27 // pred_region
          %vm192 = vcmask 130048
          %193 = vst.msk [vmem:[#allocation2] sm:$0xff] %vm192, 0.0
          %194 = vst.msk [vmem:[#allocation2 + $0x8] sm:$0xff] %vm192, 0.0
        $region40: #{tpu_custom_call.1} parent=27 // pred_fallthru
          _
        %v195 = vld [vmem:[%s156] sm:$0xff]
        %v196 = vld [vmem:[%s156 + $0x8] sm:$0xff]
        %v197 = vld [vmem:[%s156 + $0x10] sm:$0xff]
        %v198 = vld [vmem:[%s156 + $0x18] sm:$0xff]
        %v199 = vld [vmem:[%s156 + $0x20] sm:$0xff]
        %v200 = vld [vmem:[%s156 + $0x28] sm:$0xff]
        %v201 = vld [vmem:[%s165] sm:$0xff]
        %v202 = vld [vmem:[%s165 + $0x8] sm:$0xff]
        %v203 = vld [vmem:[%s165 + $0x10] sm:$0xff]
        %v204 = vld [vmem:[%s165 + $0x18] sm:$0xff]
        %v205 = vld [vmem:[%s165 + $0x20] sm:$0xff]
        %v206 = vld [vmem:[%s165 + $0x28] sm:$0xff]
        %v207 = vld [vmem:[#allocation2] sm:$0xff]
        %v208 = vld [vmem:[#allocation2 + $0x8] sm:$0xff]
        %209 = vmatprep.subr.mxu0 0.0
        %210 = vmatpush1.xpose.msra.mxu0 0.0
        %211 = vmatprep.subr.mxu0 0.0
        %212 = vmatpush1.xpose.msra.mxu0 0.0
        %213 = vmatprep.subr.mxu0 0.0
        %214 = vmatpush1.xpose.msra.mxu0 0.0
        %215 = vmatprep.subr.mxu0 0.0
        %216 = vmatpush1.xpose.msra.mxu0 0.0
        %217 = vmatprep.subr.mxu0 0.0
        %218 = vmatpush1.xpose.msra.mxu0 0.0
        %219 = vmatprep.subr.mxu0 0.0
        %220 = vmatpush1.xpose.msra.mxu0 0.0
        %221 = vmatprep.subr.mxu0 0.0
        %222 = vmatpush1.xpose.msra.mxu0 0.0
        %223 = vmatprep.subr.mxu0 0.0
        %224 = vmatpush1.xpose.msra.mxu0 0.0
        %225 = vmatprep.subr.mxu0 0.0
        %226 = vmatpush1.xpose.msra.mxu0 0.0
        %227 = vmatprep.subr.mxu0 0.0
        %228 = vmatpush1.xpose.msra.mxu0 0.0
        %229 = vmatprep.subr.mxu0 0.0
        %230 = vmatpush1.xpose.msra.mxu0 0.0
        %231 = vmatprep.subr.mxu0 0.0
        %232 = vmatpush1.xpose.msra.mxu0 0.0
        %233 = vmatprep.subr.mxu0 0.0
        %234 = vmatpush1.xpose.msra.mxu0 0.0
        %235 = vmatprep.subr.mxu0 0.0
        %236 = vmatpush1.xpose.msra.mxu0 0.0
        %237 = vmatprep.subr.mxu0 %v202
        %238 = vmatpush1.xpose.msra.mxu0 %v201
        %239 = vmatprep.subr.mxu0 %v196
        %240 = vmatpush1.xpose.msra.mxu0 %v195
        %241 = vmatprep.subr.mxu0 0.0
        %242 = vmatpush2.xpose.msra.mxu0 0.0
        %243 = vmatprep.subr.mxu0 0.0
        %244 = vmatpush2.xpose.msra.mxu0 0.0
        %245 = vmatprep.subr.mxu0 0.0
        %246 = vmatpush2.xpose.msra.mxu0 0.0
        %247 = vmatprep.subr.mxu0 0.0
        %248 = vmatpush2.xpose.msra.mxu0 0.0
        %249 = vmatprep.subr.mxu0 0.0
        %250 = vmatpush2.xpose.msra.mxu0 0.0
        %251 = vmatprep.subr.mxu0 0.0
        %252 = vmatpush2.xpose.msra.mxu0 0.0
        %253 = vmatprep.subr.mxu0 0.0
        %254 = vmatpush2.xpose.msra.mxu0 0.0
        %255 = vmatprep.subr.mxu0 0.0
        %256 = vmatpush2.xpose.msra.mxu0 0.0
        %257 = vmatprep.subr.mxu0 0.0
        %258 = vmatpush2.xpose.msra.mxu0 0.0
        %259 = vmatprep.subr.mxu0 0.0
        %260 = vmatpush2.xpose.msra.mxu0 0.0
        %261 = vmatprep.subr.mxu0 0.0
        %262 = vmatpush2.xpose.msra.mxu0 0.0
        %263 = vmatprep.subr.mxu0 0.0
        %264 = vmatpush2.xpose.msra.mxu0 0.0
        %265 = vmatprep.subr.mxu0 0.0
        %266 = vmatpush2.xpose.msra.mxu0 0.0
        %267 = vmatprep.subr.mxu0 0.0
        %268 = vmatpush2.xpose.msra.mxu0 0.0
        %269 = vmatprep.subr.mxu0 0.0
        %270 = vmatpush2.xpose.msra.mxu0 0.0
        %271 = vmatprep.subr.mxu0 0.0
        %272 = vmatpush2.xpose.msra.mxu0 0.0
        %273 = vmatprep.mubr.f32.mxu0 %v196
        %274 = vmatmul.mubr.f32.gmra.mxu0 %v195
        %v275 = vpop.f32.mrf.mxu0
        %v276 = vadd.f32 0.0, %v275
        %v277 = vpop.f32.mrf.mxu0
        %278 = vmatprep.mubr.f32.mxu0 %v202
        %279 = vmatmul.mubr.f32.gmra.mxu0 %v201
        %v280 = vpop.f32.mrf.mxu0
        %v281 = vadd.f32 0.0, %v280
        %v282 = vpop.f32.mrf.mxu0
        %283 = vdwg.mxu0
        %284 = vmatprep.subr.mxu0 0.0
        %285 = vmatpush1.xpose.msra.mxu0 0.0
        %286 = vmatprep.subr.mxu0 0.0
        %287 = vmatpush1.xpose.msra.mxu0 0.0
        %288 = vmatprep.subr.mxu0 0.0
        %289 = vmatpush1.xpose.msra.mxu0 0.0
        %290 = vmatprep.subr.mxu0 0.0
        %291 = vmatpush1.xpose.msra.mxu0 0.0
        %292 = vmatprep.subr.mxu0 0.0
        %293 = vmatpush1.xpose.msra.mxu0 0.0
        %294 = vmatprep.subr.mxu0 0.0
        %295 = vmatpush1.xpose.msra.mxu0 0.0
        %296 = vmatprep.subr.mxu0 0.0
        %297 = vmatpush1.xpose.msra.mxu0 0.0
        %298 = vmatprep.subr.mxu0 0.0
        %299 = vmatpush1.xpose.msra.mxu0 0.0
        %300 = vmatprep.subr.mxu0 0.0
        %301 = vmatpush1.xpose.msra.mxu0 0.0
        %302 = vmatprep.subr.mxu0 0.0
        %303 = vmatpush1.xpose.msra.mxu0 0.0
        %304 = vmatprep.subr.mxu0 0.0
        %305 = vmatpush1.xpose.msra.mxu0 0.0
        %306 = vmatprep.subr.mxu0 0.0
        %307 = vmatpush1.xpose.msra.mxu0 0.0
        %308 = vmatprep.subr.mxu0 0.0
        %309 = vmatpush1.xpose.msra.mxu0 0.0
        %310 = vmatprep.subr.mxu0 0.0
        %311 = vmatpush1.xpose.msra.mxu0 0.0
        %312 = vmatprep.subr.mxu0 %v204
        %313 = vmatpush1.xpose.msra.mxu0 %v203
        %314 = vmatprep.subr.mxu0 %v198
        %315 = vmatpush1.xpose.msra.mxu0 %v197
        %316 = vmatprep.subr.mxu0 0.0
        %317 = vmatpush2.xpose.msra.mxu0 0.0
        %318 = vmatprep.subr.mxu0 0.0
        %319 = vmatpush2.xpose.msra.mxu0 0.0
        %320 = vmatprep.subr.mxu0 0.0
        %321 = vmatpush2.xpose.msra.mxu0 0.0
        %322 = vmatprep.subr.mxu0 0.0
        %323 = vmatpush2.xpose.msra.mxu0 0.0
        %324 = vmatprep.subr.mxu0 0.0
        %325 = vmatpush2.xpose.msra.mxu0 0.0
        %326 = vmatprep.subr.mxu0 0.0
        %327 = vmatpush2.xpose.msra.mxu0 0.0
        %328 = vmatprep.subr.mxu0 0.0
        %329 = vmatpush2.xpose.msra.mxu0 0.0
        %330 = vmatprep.subr.mxu0 0.0
        %331 = vmatpush2.xpose.msra.mxu0 0.0
        %332 = vmatprep.subr.mxu0 0.0
        %333 = vmatpush2.xpose.msra.mxu0 0.0
        %334 = vmatprep.subr.mxu0 0.0
        %335 = vmatpush2.xpose.msra.mxu0 0.0
        %336 = vmatprep.subr.mxu0 0.0
        %337 = vmatpush2.xpose.msra.mxu0 0.0
        %338 = vmatprep.subr.mxu0 0.0
        %339 = vmatpush2.xpose.msra.mxu0 0.0
        %340 = vmatprep.subr.mxu0 0.0
        %341 = vmatpush2.xpose.msra.mxu0 0.0
        %342 = vmatprep.subr.mxu0 0.0
        %343 = vmatpush2.xpose.msra.mxu0 0.0
        %344 = vmatprep.subr.mxu0 0.0
        %345 = vmatpush2.xpose.msra.mxu0 0.0
        %346 = vmatprep.subr.mxu0 0.0
        %347 = vmatpush2.xpose.msra.mxu0 0.0
        %348 = vmatprep.mubr.f32.mxu0 %v198
        %349 = vmatmul.mubr.f32.gmra.mxu0 %v197
        %v350 = vpop.f32.mrf.mxu0
        %v351 = vadd.f32 %v276, %v350
        %v352 = vpop.f32.mrf.mxu0
        %353 = vmatprep.mubr.f32.mxu0 %v204
        %354 = vmatmul.mubr.f32.gmra.mxu0 %v203
        %v355 = vpop.f32.mrf.mxu0
        %v356 = vadd.f32 %v281, %v355
        %v357 = vpop.f32.mrf.mxu0
        %358 = vdwg.mxu0
        %359 = vmatprep.subr.mxu0 0.0
        %360 = vmatpush1.xpose.msra.mxu0 0.0
        %361 = vmatprep.subr.mxu0 0.0
        %362 = vmatpush1.xpose.msra.mxu0 0.0
        %363 = vmatprep.subr.mxu0 0.0
        %364 = vmatpush1.xpose.msra.mxu0 0.0
        %365 = vmatprep.subr.mxu0 0.0
        %366 = vmatpush1.xpose.msra.mxu0 0.0
        %367 = vmatprep.subr.mxu0 0.0
        %368 = vmatpush1.xpose.msra.mxu0 0.0
        %369 = vmatprep.subr.mxu0 0.0
        %370 = vmatpush1.xpose.msra.mxu0 0.0
        %371 = vmatprep.subr.mxu0 0.0
        %372 = vmatpush1.xpose.msra.mxu0 0.0
        %373 = vmatprep.subr.mxu0 0.0
        %374 = vmatpush1.xpose.msra.mxu0 0.0
        %375 = vmatprep.subr.mxu0 0.0
        %376 = vmatpush1.xpose.msra.mxu0 0.0
        %377 = vmatprep.subr.mxu0 0.0
        %378 = vmatpush1.xpose.msra.mxu0 0.0
        %379 = vmatprep.subr.mxu0 0.0
        %380 = vmatpush1.xpose.msra.mxu0 0.0
        %381 = vmatprep.subr.mxu0 0.0
        %382 = vmatpush1.xpose.msra.mxu0 0.0
        %383 = vmatprep.subr.mxu0 0.0
        %384 = vmatpush1.xpose.msra.mxu0 0.0
        %385 = vmatprep.subr.mxu0 0.0
        %386 = vmatpush1.xpose.msra.mxu0 0.0
        %387 = vmatprep.subr.mxu0 %v206
        %388 = vmatpush1.xpose.msra.mxu0 %v205
        %389 = vmatprep.subr.mxu0 %v200
        %390 = vmatpush1.xpose.msra.mxu0 %v199
        %391 = vmatprep.subr.mxu0 0.0
        %392 = vmatpush2.xpose.msra.mxu0 0.0
        %393 = vmatprep.subr.mxu0 0.0
        %394 = vmatpush2.xpose.msra.mxu0 0.0
        %395 = vmatprep.subr.mxu0 0.0
        %396 = vmatpush2.xpose.msra.mxu0 0.0
        %397 = vmatprep.subr.mxu0 0.0
        %398 = vmatpush2.xpose.msra.mxu0 0.0
        %399 = vmatprep.subr.mxu0 0.0
        %400 = vmatpush2.xpose.msra.mxu0 0.0
        %401 = vmatprep.subr.mxu0 0.0
        %402 = vmatpush2.xpose.msra.mxu0 0.0
        %403 = vmatprep.subr.mxu0 0.0
        %404 = vmatpush2.xpose.msra.mxu0 0.0
        %405 = vmatprep.subr.mxu0 0.0
        %406 = vmatpush2.xpose.msra.mxu0 0.0
        %407 = vmatprep.subr.mxu0 0.0
        %408 = vmatpush2.xpose.msra.mxu0 0.0
        %409 = vmatprep.subr.mxu0 0.0
        %410 = vmatpush2.xpose.msra.mxu0 0.0
        %411 = vmatprep.subr.mxu0 0.0
        %412 = vmatpush2.xpose.msra.mxu0 0.0
        %413 = vmatprep.subr.mxu0 0.0
        %414 = vmatpush2.xpose.msra.mxu0 0.0
        %415 = vmatprep.subr.mxu0 0.0
        %416 = vmatpush2.xpose.msra.mxu0 0.0
        %417 = vmatprep.subr.mxu0 0.0
        %418 = vmatpush2.xpose.msra.mxu0 0.0
        %419 = vmatprep.subr.mxu0 0.0
        %420 = vmatpush2.xpose.msra.mxu0 0.0
        %421 = vmatprep.subr.mxu0 0.0
        %422 = vmatpush2.xpose.msra.mxu0 0.0
        %423 = vmatprep.mubr.f32.mxu0 %v200
        %424 = vmatmul.mubr.f32.gmra.mxu0 %v199
        %v425 = vpop.f32.mrf.mxu0
        %v426 = vadd.f32 %v351, %v425
        %v427 = vpop.f32.mrf.mxu0
        %428 = vmatprep.mubr.f32.mxu0 %v206
        %429 = vmatmul.mubr.f32.gmra.mxu0 %v205
        %v430 = vpop.f32.mrf.mxu0
        %v431 = vadd.f32 %v356, %v430
        %v432 = vpop.f32.mrf.mxu0
        %433 = vdwg.mxu0
        %v434 = vadd.f32 %v207, %v426
        %v435 = vadd.f32 %v208, %v431
        %vm436 = vcmask 130048
        %437 = vst.msk [vmem:[#allocation2] sm:$0xff] %vm436, %v434
        %438 = vst.msk [vmem:[#allocation2 + $0x8] sm:$0xff] %vm436, %v435
        %p439 = scmp.eq.s32.totalorder %s20, 2
        // Predicated region
        $region41: #{tpu_custom_call.1} parent=27 // pred_check
          %p440 = pneg %p439
        $region42: #{tpu_custom_call.1} parent=27 // pred_check_branch
          %442 = sbr.rel (%p440) target = $region44
        $region43: #{tpu_custom_call.1} parent=27 // pred_region
          %v443 = vld [vmem:[#allocation2] sm:$0xff]
          %v444 = vld [vmem:[#allocation2 + $0x8] sm:$0xff]
          %v445 = vlaneseq
          %v446 = vshrl.u32 %v445, 7
          %v447 = vadd.s32 %v446, 8
          %v448 = vlaneseq
          %v449 = vand.u32 %v448, 127
          %vm450 = vcmp.eq.s32.totalorder %v446, %v449
          %vm451 = vcmp.eq.s32.totalorder %v447, %v449
          %v452 = vsel %vm450, %v443, 0.0
          %v453 = vsel %vm451, %v444, 0.0
          %v454 = vsel %vm436, %v452, 0.0
          %455 = vadd.xlane.f32.xlu0 %v454
          %v456 = vpop.xlane.xlu0 %455
          %v457 = vsel %vm436, %v453, 0.0
          %458 = vadd.xlane.f32.xlu0 %v457
          %v459 = vpop.xlane.xlu0 %458
          %v460 = vmul.f32 %v443, 2.0
          %v461 = vmul.f32 %v444, 2.0
          %v462 = vsub.f32 %v456, %v460
          %v463 = vsub.f32 %v459, %v461
          %464 = vxpose.xlu0.b32.start [1/16] %v456, 128
          %465 = vxpose.xlu0.b32.cont [2/16] %v459, 128
          %466 = vxpose.xlu0.b32.cont [3/16] 0.0, 128
          %467 = vxpose.xlu0.b32.cont [4/16] 0.0, 128
          %468 = vxpose.xlu0.b32.cont [5/16] 0.0, 128
          %469 = vxpose.xlu0.b32.cont [6/16] 0.0, 128
          %470 = vxpose.xlu0.b32.cont [7/16] 0.0, 128
          %471 = vxpose.xlu0.b32.cont [8/16] 0.0, 128
          %472 = vxpose.xlu0.b32.cont [9/16] 0.0, 128
          %473 = vxpose.xlu0.b32.cont [10/16] 0.0, 128
          %474 = vxpose.xlu0.b32.cont [11/16] 0.0, 128
          %475 = vxpose.xlu0.b32.cont [12/16] 0.0, 128
          %476 = vxpose.xlu0.b32.cont [13/16] 0.0, 128
          %477 = vxpose.xlu0.b32.cont [14/16] 0.0, 128
          %478 = vxpose.xlu0.b32.cont [15/16] 0.0, 128
          %479 = vxpose.xlu0.b32.end [16/16] 0.0, 128
          %v480 = vpop.trf.xlu0
          %v481 = vpop.trf.xlu0
          %v482 = vpop.trf.xlu0
          %v483 = vpop.trf.xlu0
          %v484 = vpop.trf.xlu0
          %v485 = vpop.trf.xlu0
          %v486 = vpop.trf.xlu0
          %v487 = vpop.trf.xlu0
          %v488 = vpop.trf.xlu0
          %v489 = vpop.trf.xlu0
          %v490 = vpop.trf.xlu0
          %v491 = vpop.trf.xlu0
          %v492 = vpop.trf.xlu0
          %v493 = vpop.trf.xlu0
          %v494 = vpop.trf.xlu0
          %v495 = vpop.trf.xlu0
          %v496 = vlaneseq
          %v497 = vshrl.u32 %v496, 7
          %v498 = vsub.s32 0, %v497
          %v499 = vrot.slane %v480, %v498
          %v500 = vadd.f32 %v462, %v499
          %v501 = vadd.f32 %v463, %v499
          %v502 = vmul.f32 %v500, -0.5
          %v503 = vmul.f32 %v501, -0.5
          %v504 = vmul.f32 %v502, 1.442695
          %v505 = vpow.pop %v504
          %v506 = vmul.f32 %v503, 1.442695
          %v507 = vpow.pop %v506
          %v508 = vadd.f32 %v505, 0.0
          %v509 = vadd.f32 %v507, 0.0
          %v510 = vmul.f32 %v500, -0.125
          %v511 = vmul.f32 %v501, -0.125
          %v512 = vmul.f32 %v510, 1.442695
          %v513 = vpow.pop %v512
          %v514 = vmul.f32 %v511, 1.442695
          %v515 = vpow.pop %v514
          %v516 = vadd.f32 %v508, %v513
          %v517 = vadd.f32 %v509, %v515
          %v518 = vmul.f32 %v500, -0.005
          %v519 = vmul.f32 %v501, -0.005
          %v520 = vmul.f32 %v518, 1.442695
          %v521 = vpow.pop %v520
          %v522 = vmul.f32 %v519, 1.442695
          %v523 = vpow.pop %v522
          %v524 = vadd.f32 %v516, %v521
          %v525 = vadd.f32 %v517, %v523
          %vm526 = vcmp.lt.s32.totalorder %v446, 8
          %vm527 = vcmp.lt.s32.totalorder %v447, 8
          %vm528 = vcmp.lt.s32.totalorder %v449, 8
          %vm529 = vmxor %vm526, %vm528
          %vm530 = vmxor %vm527, %vm528
          %vm531 = vmxor %vm529, 1
          %vm532 = vmxor %vm530, 1
          %v533 = vsel %vm531, 1.0, -1.0
          %v534 = vsel %vm532, 1.0, -1.0
          %v535 = vmul.f32 %v533, %v524
          %v536 = vmul.f32 %v534, %v525
          %v537 = vsel %vm436, %v535, 0.0
          %v538 = vsel %vm436, %v536, 0.0
          %v539 = vadd.f32 %v537, %v538
          %540 = vadd.xlane.f32.xlu0 %v539
          %v541 = vpop.xlane.xlu0 %540
          %v542 = vrot.slane %v541, 4
          %v543 = vadd.f32 %v541, %v542
          %v544 = vrot.slane %v543, 2
          %v545 = vadd.f32 %v543, %v544
          %v546 = vrot.slane %v545, 1
          %v547 = vadd.f32 %v545, %v546
          %s548 = vtos %v547
          %v549 = vrcp.pop 64.0
          %s550 = vtos %v549
          %s551 = smul.f32 %s548, %s550
          %s552 = smax.f32 %s551, 0.0
          %v553 = vstv %s552
          %v554 = vrsqrt.pop %v553
          %v555 = vmul.f32 %v553, %v554
          %vm556 = vcmp.eq.f32.partialorder %v553, inf
          %v557 = vsel %vm556, %v553, %v555
          %vm558 = vcmp.eq.f32.partialorder %v553, 0.0
          %v559 = vand.u32 %v553, 2147483648
          %v560 = vsel %vm558, %v559, %v557
          %s561 = vtos %v560
          %s562 = scalar_lea.smem [#allocation8], 0
          %563 = sst [smem:[%s562]] %s561
        $region44: #{tpu_custom_call.1} parent=27 // pred_fallthru
          _
        // Predicated region
        $region45: #{tpu_custom_call.1} parent=27 // pred_check
          %p564 = pneg %p85
        $region46: #{tpu_custom_call.1} parent=27 // pred_check_branch
          %566 = sbr.rel (%p564) target = $region48
        $region47: #{tpu_custom_call.1} parent=27 // pred_region
          %s568 = ssub.s32 16, 16
          %569 = vsyncadd [#allocation5], %s568
          %572 = dma.smem_to_hbm [#allocation8], 16, %s2, [#allocation5]
        $region48: #{tpu_custom_call.1} parent=27 // pred_fallthru
          _
        // Predicated region
        $region49: #{tpu_custom_call.1} parent=27 // pred_check
          %p573 = pneg %p85
        $region50: #{tpu_custom_call.1} parent=27 // pred_check_branch
          %575 = sbr.rel (%p573) target = $region52
        $region51: #{tpu_custom_call.1} parent=27 // pred_region
          %576 = dma.done [#allocation5], 16
        $region52: #{tpu_custom_call.1} parent=27 // pred_fallthru
          _
        %577 = sfence
      $region28: #{tpu_custom_call.1} parent=5 // pred_fallthru
        _
      %p578 = scmp.le.s32.totalorder 2, %s15
      // Predicated region
      $region53: #{tpu_custom_call.1} parent=5 // pred_check
        %p579 = pneg %p578
      $region54: #{tpu_custom_call.1} parent=5 // pred_check_branch
        %581 = sbr.rel (%p579) target = $region56
      $region55: #{tpu_custom_call.1} parent=5 // pred_region
        %s582 = ssub.s32 %s15, 2
      $region56: #{tpu_custom_call.1} parent=5 // pred_fallthru
        _
    $region6: #{tpu_custom_call.1} parent=1 // loop_footer
      %s19 = sadd.s32 1, %s15
    $region7: #{tpu_custom_call.1} parent=1 // loop_footer_branch
      %14 = sbr.rel target = $region3
    $region8: #{tpu_custom_call.1} parent=1 // loop_exit
      _
    %583 = vsyncpa [#allocation4], 1
    %s584 = scalar_lea.sflag [#allocation4], 1
    %585 = vsyncpa %s584, 1
    %586 = vsyncpa [#allocation7], 1
    %s587 = scalar_lea.sflag [#allocation7], 1
    %588 = vsyncpa %s587, 1
    %589 = vsyncpa [#allocation5], 1
    %s590 = scalar_lea.sflag [#allocation5], 1
    %591 = vsyncpa %s590, 1

</llo_original>
